<compile_context>
chip_gen: v6e
topology: v6e:2x2x1
jax: 0.10.0
libtpu: 0.0.40
codegen_flags: <defaults>
</compile_context>

<pallas_src>
import functools

import jax
import jax.numpy as jnp
from jax.experimental import pallas as pl
from jax.experimental.pallas import tpu as pltpu

_LANE = 128
_SUBLANE = 8
_DEFAULT_BLOCK_BYTES = 4 << 20      # ~4 MiB per input block per buffer
_MAX_ROW_TILE = 512
_VMEM_LIMIT_BYTES = 48 << 20        # <= physical VMEM on v5e/v6e/v7x


def _nmse_kernel(pred_ref, gt_ref, sq_ref, mx_ref, *, has_tail, tail_valid):
    """One (row_tile, col_tile) block: accumulate per-row sum((p-g)^2), max(g).

    sq_ref / mx_ref are (row_tile, 1) f32 output blocks that stay resident
    across the column-walk ("arbitrary") grid axis and act as accumulators.
    """
    k = pl.program_id(1)
    last = pl.num_programs(1) - 1

    @pl.when(k == 0)
    def _init():
        sq_ref[...] = jnp.zeros(sq_ref.shape, jnp.float32)
        mx_ref[...] = jnp.full(mx_ref.shape, -jnp.inf, jnp.float32)

    p = pred_ref[...].astype(jnp.float32)
    g = gt_ref[...].astype(jnp.float32)
    d = p - g
    dd = d * d

    def accum(dd_v, g_v):
        # Cross-lane reduces land on the XLU slot, which is idle in this
        # DMA-bound kernel, so per-step narrow accumulation is free.
        sq_ref[...] = sq_ref[...] + jnp.sum(dd_v, axis=-1, keepdims=True)
        mx_ref[...] = jnp.maximum(mx_ref[...],
                                  jnp.max(g_v, axis=-1, keepdims=True))

    if not has_tail:
        accum(dd, g)
    else:
        @pl.when(k < last)
        def _steady():               # lean hot path: no masking ops
            accum(dd, g)

        @pl.when(k == last)
        def _tail():                 # masking confined to the tail block only
            col = jax.lax.broadcasted_iota(jnp.int32, dd.shape, 1)
            valid = col < tail_valid
            accum(jnp.where(valid, dd, 0.0), jnp.where(valid, g, -jnp.inf))


def _fold_factor(rows_base, h):
    """Fold part of H into rows when N*C < 8 to fill vreg sublanes."""
    if rows_base >= _SUBLANE or h <= 1:
        return 1
    best = 1
    for f in range(1, h + 1):
        if h % f == 0 and rows_base * f <= _SUBLANE:
            best = f
    return best


def _row_tile(rows):
    """Full extent, or the largest multiple-of-8 divisor <= _MAX_ROW_TILE."""
    if rows <= _MAX_ROW_TILE:
        return rows
    for cand in range((_MAX_ROW_TILE // _SUBLANE) * _SUBLANE, 0, -_SUBLANE):
        if rows % cand == 0:
            return cand
    return rows   # no clean divisor: fall back to full extent


def _column_tile(row_tile, cols, itemsize, block_bytes):
    """Largest lane-aligned column tile keeping one input block <= block_bytes."""
    max_cols = max(_LANE, (block_bytes // (row_tile * itemsize)) // _LANE * _LANE)
    return cols if cols <= max_cols else max_cols


@functools.partial(jax.jit, static_argnames=("block_bytes",))
def nmse_loss(pred, gt, block_bytes=_DEFAULT_BLOCK_BYTES):
    assert pred.shape == gt.shape and pred.ndim >= 2, (pred.shape, gt.shape)
    *lead, h, w = pred.shape
    rows_base = 1
    for s in lead:
        rows_base *= s

    fold = _fold_factor(rows_base, h)
    rows = rows_base * fold
    cols = (h // fold) * w

    # Free reshape views; no padded copies, no wrapper-side casts.
    pred2d = pred.reshape(rows, cols)
    gt2d = gt.reshape(rows, cols)

    itemsize = max(pred.dtype.itemsize, gt.dtype.itemsize)
    rt = _row_tile(rows)
    n_rt = rows // rt
    tc = _column_tile(rt, cols, itemsize, block_bytes)
    n_ct = -(-cols // tc)
    has_tail = (n_ct * tc) != cols
    tail_valid = cols - (n_ct - 1) * tc

    kernel = functools.partial(_nmse_kernel, has_tail=has_tail,
                               tail_valid=tail_valid)

    cost = pl.CostEstimate(
        flops=5 * rows * cols,
        transcendentals=0,
        bytes_accessed=rows * cols * (pred.dtype.itemsize + gt.dtype.itemsize)
        + 2 * rows * 4)

    sq_part, mx_part = pl.pallas_call(
        kernel,
        out_shape=(
            jax.ShapeDtypeStruct((rows, 1), jnp.float32),
            jax.ShapeDtypeStruct((rows, 1), jnp.float32),
        ),
        grid_spec=pltpu.PrefetchScalarGridSpec(
            num_scalar_prefetch=0,
            grid=(n_rt, n_ct),
            in_specs=[
                pl.BlockSpec((rt, tc), lambda r, k: (r, k)),
                pl.BlockSpec((rt, tc), lambda r, k: (r, k)),
            ],
            out_specs=[
                pl.BlockSpec((rt, 1), lambda r, k: (r, 0)),
                pl.BlockSpec((rt, 1), lambda r, k: (r, 0)),
            ],
        ),
        compiler_params=pltpu.CompilerParams(
            dimension_semantics=("parallel", "arbitrary"),
            vmem_limit_bytes=_VMEM_LIMIT_BYTES),
        cost_estimate=cost,
    )(pred2d, gt2d)

    # Tiny epilogue: recombine h-fold partials per (n,c), apply the per-row
    # normalization and the global mean.
    sq = sq_part[:, 0]
    mx = mx_part[:, 0]
    if fold > 1:
        sq = jnp.sum(sq.reshape(rows_base, fold), axis=1)
        mx = jnp.max(mx.reshape(rows_base, fold), axis=1)
    scale = mx + jnp.float32(1e-5)
    total = rows_base * h * w
    # Divide twice: matches ((pred-gt)/scale)**2 ordering, no scale**2 overflow.
    return jnp.sum((sq / scale) / scale) / jnp.float32(total)


class NMSELoss:
    """JAX/Pallas re-implementation of NMSELoss.forward (NCHW inputs)."""

    def __call__(self, pred, gt):
        return nmse_loss(pred, gt)

    forward = __call__


if __name__ == "__main__":
    key = jax.random.PRNGKey(0)
    k1, k2, k3, k4, k5, k6 = jax.random.split(key, 6)

    def ref_nmse(pred, gt):
        scale = jnp.max(gt, axis=(-2, -1), keepdims=True) + 1e-5
        return jnp.mean(((pred - gt) / scale) ** 2)

    criterion = NMSELoss()

    # Case 1: standard small NCHW shapes (single full-width block, 1 grid step).
    pred = jax.random.normal(k1, (2, 4, 16, 16), jnp.float32)
    gt = jax.random.normal(k2, (2, 4, 16, 16), jnp.float32)
    loss = criterion(pred, gt)
    jax.block_until_ready(loss)
    assert jnp.allclose(loss, ref_nmse(pred, gt), rtol=1e-5, atol=1e-6), loss

    # Case 2: non-128-multiple spatial extent + tiny block budget to exercise
    # the multi-block column walk and the tail-only masking path.
    pred2 = jax.random.normal(k3, (2, 4, 16, 17), jnp.float32)
    gt2 = jax.random.normal(k4, (2, 4, 16, 17), jnp.float32)
    loss2 = nmse_loss(pred2, gt2, block_bytes=4096)
    jax.block_until_ready(loss2)
    assert jnp.allclose(loss2, ref_nmse(pred2, gt2), rtol=1e-5, atol=1e-6), loss2

    # Case 3: single-channel tensors (N*C < 8) exercise the H-fold path that
    # restores full sublane occupancy, plus the fold-recombining epilogue.
    pred3 = jax.random.normal(k5, (2, 1, 16, 16), jnp.float32)
    gt3 = jax.random.normal(k6, (2, 1, 16, 16), jnp.float32)
    loss3 = criterion(pred3, gt3)
    jax.block_until_ready(loss3)
    assert jnp.allclose(loss3, ref_nmse(pred3, gt3), rtol=1e-5, atol=1e-6), loss3

    print("KERNEL_OK")
</pallas_src>

<mosaic_0001>
module attributes {stable_mosaic.version = 11 : i64} {
  func.func @_nmse_kernel(%arg0: i32, %arg1: i32, %arg2: memref<8x256xf32, #tpu.memory_space<vmem>>, %arg3: memref<8x256xf32, #tpu.memory_space<vmem>>, %arg4: memref<8x1xf32, #tpu.memory_space<vmem>>, %arg5: memref<8x1xf32, #tpu.memory_space<vmem>>) attributes {dimension_semantics = [#tpu.dimension_semantics<parallel>, #tpu.dimension_semantics<arbitrary>], iteration_bounds = array<i64: 1, 1>, scalar_prefetch = 0 : i64, scratch_operands = 0 : i64, tpu.core_type = #tpu.core_type<tc>, window_params = [{transform_indices = @transform_0, window_bounds = array<i64: 8, 256>}, {transform_indices = @transform_1, window_bounds = array<i64: 8, 256>}, {transform_indices = @transform_2, window_bounds = array<i64: 8, 1>}, {transform_indices = @transform_3, window_bounds = array<i64: 8, 1>}]} {
    %c0_i32 = arith.constant 0 : i32
    %0 = arith.cmpi eq, %arg1, %c0_i32 : i32
    %1 = arith.extui %0 : i1 to i32
    %c0_i32_0 = arith.constant 0 : i32
    %2 = arith.cmpi ne, %1, %c0_i32_0 : i32
    scf.if %2 {
      %cst_13 = arith.constant 0.000000e+00 : f32
      %17 = vector.broadcast %cst_13 : f32 to vector<8x1xf32>
      %c0_14 = arith.constant 0 : index
      %c0_15 = arith.constant 0 : index
      %18 = vector.load %arg4[%c0_14, %c0_15] : memref<8x1xf32, #tpu.memory_space<vmem>>, vector<8x1xf32>
      tpu.vector_store %arg4[%c0_14, %c0_15], %17 {strides = array<i32>} : memref<8x1xf32, #tpu.memory_space<vmem>>, vector<8x1xf32>,
      %cst_16 = arith.constant 0xFF800000 : f32
      %19 = vector.broadcast %cst_16 : f32 to vector<8x1xf32>
      %c0_17 = arith.constant 0 : index
      %c0_18 = arith.constant 0 : index
      %20 = vector.load %arg5[%c0_17, %c0_18] : memref<8x1xf32, #tpu.memory_space<vmem>>, vector<8x1xf32>
      tpu.vector_store %arg5[%c0_17, %c0_18], %19 {strides = array<i32>} : memref<8x1xf32, #tpu.memory_space<vmem>>, vector<8x1xf32>,
    } else {
    }
    %c0 = arith.constant 0 : index
    %c0_1 = arith.constant 0 : index
    %3 = vector.load %arg2[%c0, %c0_1] : memref<8x256xf32, #tpu.memory_space<vmem>>, vector<8x256xf32>
    %c0_2 = arith.constant 0 : index
    %c0_3 = arith.constant 0 : index
    %4 = vector.load %arg3[%c0_2, %c0_3] : memref<8x256xf32, #tpu.memory_space<vmem>>, vector<8x256xf32>
    %5 = arith.subf %3, %4 : vector<8x256xf32>
    %6 = arith.mulf %5, %5 : vector<8x256xf32>
    %c0_4 = arith.constant 0 : index
    %c0_5 = arith.constant 0 : index
    %7 = vector.load %arg4[%c0_4, %c0_5] : memref<8x1xf32, #tpu.memory_space<vmem>>, vector<8x1xf32>
    %cst = arith.constant dense<0.000000e+00> : vector<8xf32>
    %8 = vector.multi_reduction <add>, %6, %cst [1] : vector<8x256xf32> to vector<8xf32>
    %9 = vector.shape_cast %8 : vector<8xf32> to vector<8x1xf32>
    %10 = arith.addf %7, %9 : vector<8x1xf32>
    %c0_6 = arith.constant 0 : index
    %c0_7 = arith.constant 0 : index
    %11 = vector.load %arg4[%c0_6, %c0_7] : memref<8x1xf32, #tpu.memory_space<vmem>>, vector<8x1xf32>
    tpu.vector_store %arg4[%c0_6, %c0_7], %10 {strides = array<i32>} : memref<8x1xf32, #tpu.memory_space<vmem>>, vector<8x1xf32>,
    %c0_8 = arith.constant 0 : index
    %c0_9 = arith.constant 0 : index
    %12 = vector.load %arg5[%c0_8, %c0_9] : memref<8x1xf32, #tpu.memory_space<vmem>>, vector<8x1xf32>
    %cst_10 = arith.constant dense<0xFF800000> : vector<8xf32>
    %13 = vector.multi_reduction <maximumf>, %4, %cst_10 [1] : vector<8x256xf32> to vector<8xf32>
    %14 = vector.shape_cast %13 : vector<8xf32> to vector<8x1xf32>
    %15 = arith.maximumf %12, %14 : vector<8x1xf32>
    %c0_11 = arith.constant 0 : index
    %c0_12 = arith.constant 0 : index
    %16 = vector.load %arg5[%c0_11, %c0_12] : memref<8x1xf32, #tpu.memory_space<vmem>>, vector<8x1xf32>
    tpu.vector_store %arg5[%c0_11, %c0_12], %15 {strides = array<i32>} : memref<8x1xf32, #tpu.memory_space<vmem>>, vector<8x1xf32>,
    return
  }
  func.func @transform_0(%arg0: i32, %arg1: i32) -> (i32, i32) {
    %c0_i32 = arith.constant 0 : i32
    return %arg0, %arg1 : i32, i32
  }
  func.func @transform_1(%arg0: i32, %arg1: i32) -> (i32, i32) {
    %c0_i32 = arith.constant 0 : i32
    return %arg0, %arg1 : i32, i32
  }
  func.func @transform_2(%arg0: i32, %arg1: i32) -> (i32, i32) {
    %c0_i32 = arith.constant 0 : i32
    %c0_i32_0 = arith.constant 0 : i32
    return %arg0, %c0_i32 : i32, i32
  }
  func.func @transform_3(%arg0: i32, %arg1: i32) -> (i32, i32) {
    %c0_i32 = arith.constant 0 : i32
    %c0_i32_0 = arith.constant 0 : i32
    return %arg0, %c0_i32 : i32, i32
  }
}

</mosaic_0001>

<llo_original>
// kernel: nmse_loss.1
$region0: #{nmse_loss.1}
  #allocation0 [shape = 'u32[]', space=smem, size = 0x4, offset = 0x4, fixed_abs, tag = 'smem constant byte address 0x4 - core index']
  #allocation1 [shape = 'u32[144,128]{1,0:T(1,128)}', space=vmem, size = 0x12000, scoped, tag = 'internal scratch']
  %s0 = inlined_call_operand.vmem [shape: f32[8,256], index: 0, kind: input, shape index: {}]
  %s1 = inlined_call_operand.vmem [shape: f32[8,256], index: 1, kind: input, shape index: {}]
  %s2 = inlined_call_operand.vmem [shape: f32[8,1], index: 2, kind: output, shape index: {0}]
  %s3 = inlined_call_operand.vmem [shape: f32[8,1], index: 3, kind: output, shape index: {1}]
  %4 = xla_tuple %s2, %s3
  %s5 = sld [smem:[#allocation0]]
  $region30: #{nmse_loss.1} parent=0
    _
  %s7 = ssub.s32 1, %s5
  %s8 = scalar_select 0, %s7, %s5
  // Predicated region
  $region2: #{nmse_loss.1} parent=0 // pred_check
    _
  $region3: #{nmse_loss.1} parent=0 // pred_check_branch
    %10 = sbr.rel (0) target = $region5
  $region4: #{nmse_loss.1} parent=0 // pred_region
    _
  $region5: #{nmse_loss.1} parent=0 // pred_fallthru
    _
  // Predicated region
  $region6: #{nmse_loss.1} parent=0 // pred_check
    _
  $region7: #{nmse_loss.1} parent=0 // pred_check_branch
    %12 = sbr.rel (0) target = $region9
  $region8: #{nmse_loss.1} parent=0 // pred_region
    _
  $region9: #{nmse_loss.1} parent=0 // pred_fallthru
    _
  %p13 = scmp.eq.s32.totalorder 0, 0
  // Predicated region
  $region10: #{nmse_loss.1} parent=0 // pred_check
    %p14 = pneg %p13
  $region11: #{nmse_loss.1} parent=0 // pred_check_branch
    %16 = sbr.rel (%p14) target = $region13
  $region12: #{nmse_loss.1} parent=0 // pred_region
    %vm17 = vcmask 7168
    %18 = vst.msk [vmem:[%s2] sm:$0xff] %vm17, 0.0
    %19 = vst.msk [vmem:[%s3] sm:$0xff] %vm17, -inf
  $region13: #{nmse_loss.1} parent=0 // pred_fallthru
    _
  %v20 = vld [vmem:[%s0] sm:$0xff]
  %v21 = vld [vmem:[%s0 + $0x8] sm:$0xff]
  %v22 = vld [vmem:[%s1] sm:$0xff]
  %v23 = vld [vmem:[%s1 + $0x8] sm:$0xff]
  %v24 = vsub.f32 %v20, %v22
  %v25 = vsub.f32 %v21, %v23
  %v26 = vmul.f32 %v24, %v24
  %v27 = vmul.f32 %v25, %v25
  %v28 = vld [vmem:[%s2] sm:$0xff]
  %v29 = vadd.f32 %v26, %v27
  %30 = vadd.xlane.f32.xlu0 %v29
  %v31 = vpop.xlane.xlu0 %30
  %v32 = vadd.f32 %v28, %v31
  %vm33 = vcmask 7168
  %34 = vst.msk [vmem:[%s2] sm:$0xff] %vm33, %v32
  %v35 = vld [vmem:[%s3] sm:$0xff]
  %v36 = vmax.f32 %v22, %v23
  %37 = vmax.xlane.f32.xlu0 %v36
  %v38 = vpop.xlane.xlu0 %37
  %v39 = vmax.f32 %v35, %v38
  %40 = vst.msk [vmem:[%s3] sm:$0xff] %vm33, %v39
  // Predicated region
  $region14: #{nmse_loss.1} parent=0 // pred_check
    _
  $region15: #{nmse_loss.1} parent=0 // pred_check_branch
    %42 = sbr.rel (0) target = $region17
  $region16: #{nmse_loss.1} parent=0 // pred_region
    _
  $region17: #{nmse_loss.1} parent=0 // pred_fallthru
    _
  // Predicated region
  $region18: #{nmse_loss.1} parent=0 // pred_check
    _
  $region19: #{nmse_loss.1} parent=0 // pred_check_branch
    %44 = sbr.rel (0) target = $region21
  $region20: #{nmse_loss.1} parent=0 // pred_region
    _
  $region21: #{nmse_loss.1} parent=0 // pred_fallthru
    _
  // Predicated region
  $region22: #{nmse_loss.1} parent=0 // pred_check
    _
  $region23: #{nmse_loss.1} parent=0 // pred_check_branch
    %46 = sbr.rel (0) target = $region25
  $region24: #{nmse_loss.1} parent=0 // pred_region
    _
  $region25: #{nmse_loss.1} parent=0 // pred_fallthru
    _
  // Predicated region
  $region26: #{nmse_loss.1} parent=0 // pred_check
    _
  $region27: #{nmse_loss.1} parent=0 // pred_check_branch
    %48 = sbr.rel (0) target = $region29
  $region28: #{nmse_loss.1} parent=0 // pred_region
    _
  $region29: #{nmse_loss.1} parent=0 // pred_fallthru
    _

</llo_original>
